<compile_context>
chip_gen: v7x
topology: tpu7x:2x2x1
jax: 0.10.0
libtpu: 0.0.40
codegen_flags: <defaults>
</compile_context>

<pallas_src>
import functools

import jax
import jax.numpy as jnp
from jax.experimental import pallas as pl
from jax.experimental.pallas import tpu as pltpu


def _focal_sum_kernel(x_ref, t_ref, out_ref, *, n_valid, block_rows,
                      alpha, gamma, needs_mask):
    """Accumulate per-element focal loss lane-wise into the resident out block."""
    p = pl.program_id(0)   # parallel (core) axis
    i = pl.program_id(1)   # reduction axis

    @pl.when(i == 0)
    def _():
        out_ref[...] = jnp.zeros_like(out_ref)

    x = x_ref[...].astype(jnp.float32)
    t = t_ref[...].astype(jnp.float32)

    prob = jax.nn.sigmoid(x)
    # binary_cross_entropy with PyTorch's clamp of the log terms at -100.
    log_p = jnp.maximum(jnp.log(prob), -100.0)
    log_not_p = jnp.maximum(jnp.log(1.0 - prob), -100.0)
    bce = -(t * log_p + (1.0 - t) * log_not_p)
    pt = jnp.exp(-bce)

    one_minus_pt = 1.0 - pt
    if gamma == 2:                      # default: avoid pow -> exp/log on EUP
        mod = one_minus_pt * one_minus_pt
    elif gamma == 1:
        mod = one_minus_pt
    elif gamma == 0:
        mod = jnp.ones_like(one_minus_pt)
    else:
        mod = one_minus_pt ** gamma
    focal = (alpha * mod) * bce

    if needs_mask:
        # Zero the contribution of padded tail elements.
        row_start = (p * pl.num_programs(1) + i) * block_rows
        rows = jax.lax.broadcasted_iota(jnp.int32, focal.shape, 0)
        lanes = jax.lax.broadcasted_iota(jnp.int32, focal.shape, 1)
        idx = (row_start + rows) * 128 + lanes
        focal = jnp.where(idx < n_valid, focal, 0.0)

    out_ref[...] += focal


def _round_up(x, m):
    return (x + m - 1) // m * m


@functools.partial(jax.jit, static_argnames=("alpha", "gamma"))
def focal_loss(inputs, targets, *, alpha=1.0, gamma=2):
    """Pallas TPU implementation of FocalLoss.forward. Returns a scalar."""
    assert inputs.shape == targets.shape
    n_valid = 1
    for d in inputs.shape:
        n_valid *= d

    lanes = 128
    n_cores = 2            # parallel split (used by v7x megacore; harmless elsewhere)
    max_block_rows = 1024  # 1024 * 128 = 128K elements / <=512 KiB f32 per grid step

    n_rows = -(-n_valid // lanes)
    block_rows = max(8, min(max_block_rows,
                            _round_up(-(-n_rows // n_cores), 8)))
    steps = -(-n_rows // (n_cores * block_rows))
    padded_rows = n_cores * steps * block_rows
    padded = padded_rows * lanes

    # Lane-dense relayout: flatten, pad only when needed, view as (rows, 128).
    # Keep the logits' own float dtype (e.g. bf16) to minimise HBM bytes; the
    # kernel upcasts to f32.
    x = jnp.ravel(inputs)
    t = jnp.ravel(targets)
    if not jnp.issubdtype(t.dtype, jnp.floating):
        t = t.astype(jnp.float32)       # matches targets.float()
    if padded > n_valid:
        x = jnp.pad(x, (0, padded - n_valid))
        t = jnp.pad(t, (0, padded - n_valid))
    x = x.reshape(padded_rows, lanes)
    t = t.reshape(padded_rows, lanes)

    kernel = functools.partial(
        _focal_sum_kernel,
        n_valid=n_valid,
        block_rows=block_rows,
        alpha=float(alpha),
        gamma=gamma,
        needs_mask=(padded > n_valid))

    partial_sums = pl.pallas_call(
        kernel,
        out_shape=jax.ShapeDtypeStruct((n_cores * block_rows, lanes),
                                       jnp.float32),
        grid_spec=pltpu.PrefetchScalarGridSpec(
            num_scalar_prefetch=0,
            grid=(n_cores, steps),
            in_specs=[
                pl.BlockSpec((block_rows, lanes),
                             lambda p, i: (p * steps + i, 0)),
                pl.BlockSpec((block_rows, lanes),
                             lambda p, i: (p * steps + i, 0)),
            ],
            out_specs=pl.BlockSpec((block_rows, lanes),
                                   lambda p, i: (p, 0)),
        ),
        compiler_params=pltpu.CompilerParams(
            dimension_semantics=("parallel", "arbitrary")),
    )(x, t)

    # Single cross-lane reduction + mean, done once outside the kernel on the
    # tiny partial-sum array.
    return jnp.sum(partial_sums) / jnp.float32(n_valid)


def _focal_loss_ref(inputs, targets, alpha=1.0, gamma=2):
    """Pure-JAX reference mirroring the PyTorch FocalLoss forward."""
    p = jax.nn.sigmoid(inputs.astype(jnp.float32))
    t = targets.astype(jnp.float32)
    log_p = jnp.maximum(jnp.log(p), -100.0)
    log_not_p = jnp.maximum(jnp.log(1.0 - p), -100.0)
    bce = -(t * log_p + (1.0 - t) * log_not_p)
    pt = jnp.exp(-bce)
    return jnp.mean(alpha * (1.0 - pt) ** gamma * bce)


if __name__ == "__main__":
    key = jax.random.PRNGKey(0)
    k1, k2, k3, k4 = jax.random.split(key, 4)

    # Logits from the boundary head: (batch, channels, H, W).
    shape = (2, 4, 16, 16)
    inputs = jax.random.normal(k1, shape, dtype=jnp.float32)
    # Binary boundary targets.
    targets = (jax.random.uniform(k2, shape) > 0.5).astype(jnp.float32)

    loss = focal_loss(inputs, targets)
    jax.block_until_ready(loss)
    ref = _focal_loss_ref(inputs, targets)
    assert jnp.allclose(loss, ref, atol=1e-5, rtol=1e-5), (loss, ref)

    # Odd-sized shape exercises the padded-tail masking path.
    shape2 = (3, 5, 7, 9)
    inputs2 = 3.0 * jax.random.normal(k3, shape2, dtype=jnp.float32)
    targets2 = (jax.random.uniform(k4, shape2) > 0.5).astype(jnp.float32)
    loss2 = focal_loss(inputs2, targets2)
    jax.block_until_ready(loss2)
    ref2 = _focal_loss_ref(inputs2, targets2)
    assert jnp.allclose(loss2, ref2, atol=1e-5, rtol=1e-5), (loss2, ref2)

    print("KERNEL_OK")
</pallas_src>

<mosaic_0001>
module attributes {stable_mosaic.version = 11 : i64} {
  func.func @_focal_sum_kernel(%arg0: i32, %arg1: i32, %arg2: memref<8x128xf32, #tpu.memory_space<vmem>>, %arg3: memref<8x128xf32, #tpu.memory_space<vmem>>, %arg4: memref<8x128xf32, #tpu.memory_space<vmem>>) attributes {dimension_semantics = [#tpu.dimension_semantics<parallel>, #tpu.dimension_semantics<arbitrary>], iteration_bounds = array<i64: 2, 1>, scalar_prefetch = 0 : i64, scratch_operands = 0 : i64, tpu.core_type = #tpu.core_type<tc>, window_params = [{transform_indices = @transform_0, window_bounds = array<i64: 8, 128>}, {transform_indices = @transform_1, window_bounds = array<i64: 8, 128>}, {transform_indices = @transform_2, window_bounds = array<i64: 8, 128>}]} {
    %c0_i32 = arith.constant 0 : i32
    %0 = arith.cmpi eq, %arg1, %c0_i32 : i32
    %1 = arith.extui %0 : i1 to i32
    %c0_i32_0 = arith.constant 0 : i32
    %2 = arith.cmpi ne, %1, %c0_i32_0 : i32
    scf.if %2 {
      %cst_16 = arith.constant 0.000000e+00 : f32
      %37 = vector.broadcast %cst_16 : f32 to vector<8x128xf32>
      %c0_17 = arith.constant 0 : index
      %c0_18 = arith.constant 0 : index
      %38 = vector.load %arg4[%c0_17, %c0_18] : memref<8x128xf32, #tpu.memory_space<vmem>>, vector<8x128xf32>
      tpu.vector_store %arg4[%c0_17, %c0_18], %37 {strides = array<i32>} : memref<8x128xf32, #tpu.memory_space<vmem>>, vector<8x128xf32>,
    } else {
    }
    %c0 = arith.constant 0 : index
    %c0_1 = arith.constant 0 : index
    %3 = vector.load %arg2[%c0, %c0_1] : memref<8x128xf32, #tpu.memory_space<vmem>>, vector<8x128xf32>
    %c0_2 = arith.constant 0 : index
    %c0_3 = arith.constant 0 : index
    %4 = vector.load %arg3[%c0_2, %c0_3] : memref<8x128xf32, #tpu.memory_space<vmem>>, vector<8x128xf32>
    %5 = arith.negf %3 : vector<8x128xf32>
    %6 = math.exp %5 : vector<8x128xf32>
    %cst = arith.constant 1.000000e+00 : f32
    %7 = vector.broadcast %cst : f32 to vector<8x128xf32>
    %8 = arith.addf %7, %6 : vector<8x128xf32>
    %9 = arith.divf %7, %8 : vector<8x128xf32>
    %10 = math.log %9 : vector<8x128xf32>
    %cst_4 = arith.constant -1.000000e+02 : f32
    %11 = vector.broadcast %cst_4 : f32 to vector<8x128xf32>
    %12 = arith.maximumf %10, %11 : vector<8x128xf32>
    %cst_5 = arith.constant 1.000000e+00 : f32
    %13 = vector.broadcast %cst_5 : f32 to vector<8x128xf32>
    %14 = arith.subf %13, %9 : vector<8x128xf32>
    %15 = math.log %14 : vector<8x128xf32>
    %cst_6 = arith.constant -1.000000e+02 : f32
    %16 = vector.broadcast %cst_6 : f32 to vector<8x128xf32>
    %17 = arith.maximumf %15, %16 : vector<8x128xf32>
    %18 = arith.mulf %4, %12 : vector<8x128xf32>
    %cst_7 = arith.constant 1.000000e+00 : f32
    %19 = vector.broadcast %cst_7 : f32 to vector<8x128xf32>
    %20 = arith.subf %19, %4 : vector<8x128xf32>
    %21 = arith.mulf %20, %17 : vector<8x128xf32>
    %22 = arith.addf %18, %21 : vector<8x128xf32>
    %cst_8 = arith.constant 0.000000e+00 : f32
    %23 = vector.broadcast %cst_8 : f32 to vector<8x128xf32>
    %24 = arith.subf %23, %22 : vector<8x128xf32>
    %cst_9 = arith.constant 0.000000e+00 : f32
    %25 = vector.broadcast %cst_9 : f32 to vector<8x128xf32>
    %26 = arith.subf %25, %24 : vector<8x128xf32>
    %27 = math.exp %26 : vector<8x128xf32>
    %cst_10 = arith.constant 1.000000e+00 : f32
    %28 = vector.broadcast %cst_10 : f32 to vector<8x128xf32>
    %29 = arith.subf %28, %27 : vector<8x128xf32>
    %30 = arith.mulf %29, %29 : vector<8x128xf32>
    %cst_11 = arith.constant 1.000000e+00 : f32
    %31 = vector.broadcast %cst_11 : f32 to vector<8x128xf32>
    %32 = arith.mulf %31, %30 : vector<8x128xf32>
    %33 = arith.mulf %32, %24 : vector<8x128xf32>
    %c0_12 = arith.constant 0 : index
    %c0_13 = arith.constant 0 : index
    %34 = vector.load %arg4[%c0_12, %c0_13] : memref<8x128xf32, #tpu.memory_space<vmem>>, vector<8x128xf32>
    %35 = arith.addf %34, %33 : vector<8x128xf32>
    %c0_14 = arith.constant 0 : index
    %c0_15 = arith.constant 0 : index
    %36 = vector.load %arg4[%c0_14, %c0_15] : memref<8x128xf32, #tpu.memory_space<vmem>>, vector<8x128xf32>
    tpu.vector_store %arg4[%c0_14, %c0_15], %35 {strides = array<i32>} : memref<8x128xf32, #tpu.memory_space<vmem>>, vector<8x128xf32>,
    return
  }
  func.func @transform_0(%arg0: i32, %arg1: i32) -> (i32, i32) {
    %c1_i32 = arith.constant 1 : i32
    %0 = arith.muli %arg0, %c1_i32 : i32
    %1 = arith.addi %0, %arg1 : i32
    %c0_i32 = arith.constant 0 : i32
    %c0_i32_0 = arith.constant 0 : i32
    return %1, %c0_i32 : i32, i32
  }
  func.func @transform_1(%arg0: i32, %arg1: i32) -> (i32, i32) {
    %c1_i32 = arith.constant 1 : i32
    %0 = arith.muli %arg0, %c1_i32 : i32
    %1 = arith.addi %0, %arg1 : i32
    %c0_i32 = arith.constant 0 : i32
    %c0_i32_0 = arith.constant 0 : i32
    return %1, %c0_i32 : i32, i32
  }
  func.func @transform_2(%arg0: i32, %arg1: i32) -> (i32, i32) {
    %c0_i32 = arith.constant 0 : i32
    %c0_i32_0 = arith.constant 0 : i32
    return %arg0, %c0_i32 : i32, i32
  }
}

</mosaic_0001>

<llo_original>
// kernel: focal_loss.1
$region0: #{focal_loss.1}
  #allocation0 [shape = 'u32[]', space=smem, size = 0x4, offset = 0x4, fixed_abs, tag = 'smem constant byte address 0x4 - core index']
  #allocation1 [shape = 'u32[144,128]{1,0:T(1,128)}', space=vmem, size = 0x12000, scoped, tag = 'internal scratch']
  %s0 = inlined_call_operand.vmem [shape: f32[16,128], index: 0, kind: input, shape index: {}]
  %s1 = inlined_call_operand.vmem [shape: f32[16,128], index: 1, kind: input, shape index: {}]
  %s2 = inlined_call_operand.vmem [shape: f32[16,128], index: 2, kind: output, shape index: {}]
  %s3 = sld [smem:[#allocation0]]
  $region45: #{focal_loss.1} parent=0
    _
  %s5 = ssub.s32 1, %s3
  %s6 = scalar_select 0, %s5, %s3
  loop: start=0, step=1, limit=4
  $region2: #{focal_loss.1} parent=0 // loop_pre_header
    _
  $region3: #{focal_loss.1} parent=0 // loop_header
    %s8 = sphi 0, %s12
    %p9 = scmp.ge.s32.totalorder %s8, 4
    %s15 = sphi 0, %s27
    %s16 = sphi 0, %s23
    %s17 = sphi 0, %s15
    %s18 = sphi 0, %s16
    %s19 = sphi 0, %s17
    %s20 = sphi 0, %s18
    %s32 = sphi 0, %s34
    %s35 = sphi 0, %s32
    %s36 = sphi 0, %s35
    %s52 = sphi 0, %s36
    %s60 = sphi 0, %s62
    %s63 = sphi 0, %s60
    %s64 = sphi 0, %s63
    %s80 = sphi 0, %s64
    %s86 = sphi 0, %s88
    %s89 = sphi 0, %s86
    %s90 = sphi 0, %s89
    %s106 = sphi 0, %s90
  $region4: #{focal_loss.1} parent=0 // loop_header_branch
    %11 = sbr.rel (%p9) target = $region8
  $region5: #{focal_loss.1} parent=0 // loop_body
    %s13 = ssub.s32 %s8, 1
    %s14 = ssub.s32 %s8, 2
    %s21 = sadd.s32 1, %s16
    %p22 = scmp.ge.s32.totalorder %s21, 1
    %s23 = scalar_select %p22, 0, %s21
    %s24 = sadd.s32 1, %s15
    %s25 = scalar_select %p22, %s24, %s15
    %p26 = scmp.ge.s32.totalorder %s25, 2
    %s27 = scalar_select %p26, 0, %s25
    %s28 = sadd.s32 %s15, %s16
    %s29 = sadd.s32 %s27, %s23
    %s30 = ssub.s32 %s28, %s29
    %p31 = scmp.eq.s32.totalorder %s30, 0
    %s33 = sadd.s32 %s32, 1
    %s34 = scalar_select %p31, %s32, %s33
    %p37 = pneg %p31
    %p38 = scmp.eq.s32.totalorder %s8, 1
    %p39 = por %p37, %p38
    %p40 = scmp.ne.s32.totalorder %s32, %s35
    %p41 = scmp.eq.s32.totalorder %s8, 0
    %p42 = por %p40, %p41
    %p43 = scmp.ne.s32.totalorder %s32, %s35
    %p44 = scmp.eq.s32.totalorder %s13, 1
    %p45 = por %p43, %p44
    %p46 = scmp.ne.s32.totalorder %s35, %s36
    %p47 = scmp.eq.s32.totalorder %s13, 0
    %p48 = por %p46, %p47
    %p49 = scmp.ne.s32.totalorder %s35, %s36
    %p50 = scmp.eq.s32.totalorder %s14, 1
    %p51 = por %p49, %p50
    %p53 = scmp.ne.s32.totalorder %s36, %s52
    %p54 = scmp.eq.s32.totalorder %s14, 0
    %p55 = por %p53, %p54
    %s56 = sadd.s32 %s15, %s16
    %s57 = sadd.s32 %s27, %s23
    %s58 = ssub.s32 %s56, %s57
    %p59 = scmp.eq.s32.totalorder %s58, 0
    %s61 = sadd.s32 %s60, 1
    %s62 = scalar_select %p59, %s60, %s61
    %p65 = pneg %p59
    %p66 = scmp.eq.s32.totalorder %s8, 1
    %p67 = por %p65, %p66
    %p68 = scmp.ne.s32.totalorder %s60, %s63
    %p69 = scmp.eq.s32.totalorder %s8, 0
    %p70 = por %p68, %p69
    %p71 = scmp.ne.s32.totalorder %s60, %s63
    %p72 = scmp.eq.s32.totalorder %s13, 1
    %p73 = por %p71, %p72
    %p74 = scmp.ne.s32.totalorder %s63, %s64
    %p75 = scmp.eq.s32.totalorder %s13, 0
    %p76 = por %p74, %p75
    %p77 = scmp.ne.s32.totalorder %s63, %s64
    %p78 = scmp.eq.s32.totalorder %s14, 1
    %p79 = por %p77, %p78
    %p81 = scmp.ne.s32.totalorder %s64, %s80
    %p82 = scmp.eq.s32.totalorder %s14, 0
    %p83 = por %p81, %p82
    %s84 = ssub.s32 %s15, %s27
    %p85 = scmp.eq.s32.totalorder %s84, 0
    %s87 = sadd.s32 %s86, 1
    %s88 = scalar_select %p85, %s86, %s87
    %p91 = pneg %p85
    %p92 = scmp.eq.s32.totalorder %s8, 1
    %p93 = por %p91, %p92
    %p94 = scmp.ne.s32.totalorder %s86, %s89
    %p95 = scmp.eq.s32.totalorder %s8, 0
    %p96 = por %p94, %p95
    %p97 = scmp.ne.s32.totalorder %s86, %s89
    %p98 = scmp.eq.s32.totalorder %s13, 1
    %p99 = por %p97, %p98
    %p100 = scmp.ne.s32.totalorder %s89, %s90
    %p101 = scmp.eq.s32.totalorder %s13, 0
    %p102 = por %p100, %p101
    %p103 = scmp.ne.s32.totalorder %s89, %s90
    %p104 = scmp.eq.s32.totalorder %s14, 1
    %p105 = por %p103, %p104
    %p107 = scmp.ne.s32.totalorder %s90, %s106
    %p108 = scmp.eq.s32.totalorder %s14, 0
    %p109 = por %p107, %p108
    %p110 = scmp.le.s32.totalorder 1, %s8
    %p111 = scmp.lt.s32.totalorder %s8, 3
    %p112 = pnand %p110, %p111
    %p113 = pneg %p112
    // Predicated region
    $region9: #{focal_loss.1} parent=5 // pred_check
      _
    $region10: #{focal_loss.1} parent=5 // pred_check_branch
      %115 = sbr.rel (%p112) target = $region12
    $region11: #{focal_loss.1} parent=5 // pred_region
      %s116 = ssub.s32 %s8, 1
    $region12: #{focal_loss.1} parent=5 // pred_fallthru
      _
    %p117 = scmp.lt.s32.totalorder %s8, 2
    // Predicated region
    $region13: #{focal_loss.1} parent=5 // pred_check
      %p118 = pneg %p117
    $region14: #{focal_loss.1} parent=5 // pred_check_branch
      %120 = sbr.rel (%p118) target = $region16
    $region15: #{focal_loss.1} parent=5 // pred_region
      // Predicated region
      $region17: #{focal_loss.1} parent=15 // pred_check
        %p121 = pneg %p42
      $region18: #{focal_loss.1} parent=15 // pred_check_branch
        %123 = sbr.rel (%p121) target = $region20
      $region19: #{focal_loss.1} parent=15 // pred_region
        %s124 = sadd.s32 %s15, %s16
        %p125 = scmp.lt.s32.totalorder %s124, 1
        %s126 = scalar_select %p125, %s124, 1
        %s127 = smul.addr %s126, 8
        %s128 = scalar_lea.vmem %s0, %s127
        %s129 = sadd.s32 %s15, %s16
      $region20: #{focal_loss.1} parent=15 // pred_fallthru
        _
      // Predicated region
      $region21: #{focal_loss.1} parent=15 // pred_check
        %p130 = pneg %p70
      $region22: #{focal_loss.1} parent=15 // pred_check_branch
        %132 = sbr.rel (%p130) target = $region24
      $region23: #{focal_loss.1} parent=15 // pred_region
        %s133 = sadd.s32 %s15, %s16
        %p134 = scmp.lt.s32.totalorder %s133, 1
        %s135 = scalar_select %p134, %s133, 1
        %s136 = smul.addr %s135, 8
        %s137 = scalar_lea.vmem %s1, %s136
        %s138 = sadd.s32 %s15, %s16
      $region24: #{focal_loss.1} parent=15 // pred_fallthru
        _
    $region16: #{focal_loss.1} parent=5 // pred_fallthru
      _
    %p139 = scmp.le.s32.totalorder 1, %s8
    %p140 = scmp.lt.s32.totalorder %s8, 3
    %p141 = pnand %p139, %p140
    %p142 = pneg %p141
    // Predicated region
    $region25: #{focal_loss.1} parent=5 // pred_check
      _
    $region26: #{focal_loss.1} parent=5 // pred_check_branch
      %144 = sbr.rel (%p141) target = $region28
    $region27: #{focal_loss.1} parent=5 // pred_region
      %s145 = ssub.s32 %s8, 1
      %s146 = sadd.s32 %s17, %s18
      %p147 = scmp.lt.s32.totalorder %s146, 1
      %s148 = scalar_select %p147, %s146, 1
      %s149 = smul.addr %s148, 8
      %s150 = scalar_lea.vmem %s0, %s149
      %p151 = pneg %p48
      %p152 = pneg %p45
      %s153 = sadd.s32 %s17, %s18
      %p154 = scmp.lt.s32.totalorder %s153, 1
      %s155 = scalar_select %p154, %s153, 1
      %s156 = smul.addr %s155, 8
      %s157 = scalar_lea.vmem %s1, %s156
      %p158 = pneg %p76
      %p159 = pneg %p73
      %p160 = pneg %p102
      %p161 = pneg %p99
      %p162 = scmp.lt.s32.totalorder %s17, 1
      %s163 = scalar_select %p162, %s17, 1
      %s164 = smul.addr %s163, 8
      %s165 = scalar_lea.vmem %s2, %s164
      %s166 = sadd.s32 %s17, %s18
      %p167 = scmp.lt.s32.totalorder %s166, 1
      %s168 = scalar_select %p167, %s166, 1
      %s169 = smul.addr %s168, 8
      %s170 = scalar_lea.vmem %s0, %s169
      %s171 = sadd.s32 %s17, %s18
      %s172 = sadd.s32 %s17, %s18
      %p173 = scmp.lt.s32.totalorder %s172, 1
      %s174 = scalar_select %p173, %s172, 1
      %s175 = smul.addr %s174, 8
      %s176 = scalar_lea.vmem %s1, %s175
      %s177 = sadd.s32 %s17, %s18
      %p178 = scmp.lt.s32.totalorder %s17, 1
      %s179 = scalar_select %p178, %s17, 1
      %s180 = smul.addr %s179, 8
      %s181 = scalar_lea.vmem %s2, %s180
      %p182 = scmp.eq.s32.totalorder %s18, 0
      // Predicated region
      $region29: #{focal_loss.1} parent=27 // pred_check
        %p183 = pneg %p182
      $region30: #{focal_loss.1} parent=27 // pred_check_branch
        %185 = sbr.rel (%p183) target = $region32
      $region31: #{focal_loss.1} parent=27 // pred_region
        %186 = vst [vmem:[%s181] sm:$0xff] 0.0
      $region32: #{focal_loss.1} parent=27 // pred_fallthru
        _
      %v187 = vld [vmem:[%s170] sm:$0xff]
      %v188 = vld [vmem:[%s176] sm:$0xff]
      %v189 = vxor.u32 %v187, 2147483648
      %v190 = vmul.f32 %v189, 1.442695
      %v191 = vpow.pop %v190
      %v192 = vadd.f32 %v191, 1.0
      %v193 = vrcp.pop %v192
      %v194 = vmul.f32 1.0, %v193
      %v195 = vlog2.pop %v194
      %v196 = vmul.f32 %v195, 0.6931472
      %v197 = vmax.f32 %v196, -100.0
      %v198 = vsub.f32 1.0, %v194
      %v199 = vlog2.pop %v198
      %v200 = vmul.f32 %v199, 0.6931472
      %v201 = vmax.f32 %v200, -100.0
      %v202 = vmul.f32 %v188, %v197
      %v203 = vsub.f32 1.0, %v188
      %v204 = vmul.f32 %v203, %v201
      %v205 = vadd.f32 %v202, %v204
      %v206 = vsub.f32 0.0, %v205
      %v207 = vsub.f32 0.0, %v206
      %v208 = vmul.f32 %v207, 1.442695
      %v209 = vpow.pop %v208
      %v210 = vsub.f32 1.0, %v209
      %v211 = vmul.f32 %v210, %v210
      %v212 = vmul.f32 %v211, %v206
      %v213 = vld [vmem:[%s181] sm:$0xff]
      %v214 = vadd.f32 %v213, %v212
      %215 = vst [vmem:[%s181] sm:$0xff] %v214
      %p216 = scmp.lt.s32.totalorder %s17, 1
      %s217 = scalar_select %p216, %s17, 1
      %s218 = smul.addr %s217, 8
      %s219 = scalar_lea.vmem %s2, %s218
      // Predicated region
      $region33: #{focal_loss.1} parent=27 // pred_check
        %p220 = pneg %p99
      $region34: #{focal_loss.1} parent=27 // pred_check_branch
        %222 = sbr.rel (%p220) target = $region36
      $region35: #{focal_loss.1} parent=27 // pred_region
        _
      $region36: #{focal_loss.1} parent=27 // pred_fallthru
        _
    $region28: #{focal_loss.1} parent=5 // pred_fallthru
      _
    %p223 = scmp.le.s32.totalorder 2, %s8
    // Predicated region
    $region37: #{focal_loss.1} parent=5 // pred_check
      %p224 = pneg %p223
    $region38: #{focal_loss.1} parent=5 // pred_check_branch
      %226 = sbr.rel (%p224) target = $region40
    $region39: #{focal_loss.1} parent=5 // pred_region
      %s227 = ssub.s32 %s8, 2
      // Predicated region
      $region41: #{focal_loss.1} parent=39 // pred_check
        %p228 = pneg %p105
      $region42: #{focal_loss.1} parent=39 // pred_check_branch
        %230 = sbr.rel (%p228) target = $region44
      $region43: #{focal_loss.1} parent=39 // pred_region
        %p231 = scmp.lt.s32.totalorder %s19, 1
        %s232 = scalar_select %p231, %s19, 1
        %s233 = smul.addr %s232, 8
        %s234 = scalar_lea.vmem %s2, %s233
      $region44: #{focal_loss.1} parent=39 // pred_fallthru
        _
    $region40: #{focal_loss.1} parent=5 // pred_fallthru
      _
  $region6: #{focal_loss.1} parent=0 // loop_footer
    %s12 = sadd.s32 1, %s8
  $region7: #{focal_loss.1} parent=0 // loop_footer_branch
    %7 = sbr.rel target = $region3
  $region8: #{focal_loss.1} parent=0 // loop_exit
    _

</llo_original>
